<compile_context>
chip_gen: v7x
topology: tpu7x:2x2x1
jax: 0.10.0
libtpu: 0.0.40
codegen_flags: <defaults>
</compile_context>

<pallas_src>
import jax
import jax.numpy as jnp
from jax.experimental import pallas as pl
from jax.experimental.pallas import tpu as pltpu

LANE = 128
SUBLANE = 8
STRIP_ROWS = 1024      # inner strip: 1024x128 f32 = 512 KiB per live temporary
MAX_TILE_ROWS = 8192   # 8192x128 f32 = 4 MiB per input per buffer (16 MiB dbl-buffered)


def _round_up(x, m):
    return ((x + m - 1) // m) * m


def _make_is_kernel(eps_list, weight_list, *, tile_rows, strip_rows, n_blocks,
                    rows, n_elems):
    """Kernel emitting an (8,128) partial of sum_n w_n*(r_n - log r_n) per block."""
    n_mix = len(eps_list)
    n_strips = tile_rows // strip_rows
    covered_elems = n_blocks * tile_rows * LANE
    needs_mask = covered_elems != n_elems
    valid_rows_last = rows - (n_blocks - 1) * tile_rows
    # When all weights are equal, fuse logs: sum_n w*log(r_n) == w*log(prod_n r_n)
    # -> a single EUP log per element regardless of n_mix.
    fuse_logs = n_mix > 1 and all(w == weight_list[0] for w in weight_list)

    def strip_partial(o_ref, t_ref, row0, mask_elem_base=None):
        o = o_ref[pl.ds(row0, strip_rows), :].astype(jnp.float32)
        t = t_ref[pl.ds(row0, strip_rows), :].astype(jnp.float32)
        o2 = o * o
        t2 = t * t
        if fuse_logs:
            w = jnp.float32(weight_list[0])
            r_sum = None
            r_prod = None
            for eps in eps_list:
                e = jnp.float32(eps)
                r = (t2 + e) / (o2 + e)
                r_sum = r if r_sum is None else r_sum + r
                r_prod = r if r_prod is None else r_prod * r
            total = w * (r_sum - jnp.log(r_prod))
        else:
            total = None
            for eps, w in zip(eps_list, weight_list):
                e = jnp.float32(eps)
                r = (t2 + e) / (o2 + e)
                term = jnp.float32(w) * (r - jnp.log(r))
                total = term if total is None else total + term
        if mask_elem_base is not None:
            # Only strips crossing the n_elems boundary (last block) pay this.
            row_idx = jax.lax.broadcasted_iota(jnp.int32, (strip_rows, LANE), 0)
            lane_idx = jax.lax.broadcasted_iota(jnp.int32, (strip_rows, LANE), 1)
            elem_idx = mask_elem_base + row_idx * LANE + lane_idx
            total = jnp.where(elem_idx < n_elems, total, 0.0)
        # (strip_rows,128) -> (8,128): pure elementwise vreg adds (no XLU).
        return total.reshape(strip_rows // SUBLANE, SUBLANE, LANE).sum(axis=0)

    def full_tile_partial(o_ref, t_ref):
        if n_strips == 1:
            return strip_partial(o_ref, t_ref, 0)

        def body(s, acc):
            row0 = pl.multiple_of(s * strip_rows, strip_rows)
            return acc + strip_partial(o_ref, t_ref, row0)

        return jax.lax.fori_loop(0, n_strips, body,
                                 jnp.zeros((SUBLANE, LANE), jnp.float32),
                                 unroll=True)

    def last_tile_partial(o_ref, t_ref):
        # Static strip loop over the valid region of the (partial) last block;
        # strips entirely past the valid region are skipped, and only the
        # boundary strip is element-masked (handles zero-pad and OOB garbage).
        n_valid_strips = -(-valid_rows_last // strip_rows)
        block_base = (n_blocks - 1) * tile_rows * LANE
        acc = jnp.zeros((SUBLANE, LANE), jnp.float32)
        for s in range(n_valid_strips):
            strip_base = block_base + s * strip_rows * LANE
            mask_base = strip_base if (strip_base + strip_rows * LANE) > n_elems else None
            acc = acc + strip_partial(o_ref, t_ref, s * strip_rows, mask_base)
        return acc

    def kernel(o_ref, t_ref, out_ref):
        if not needs_mask:
            out_ref[...] = full_tile_partial(o_ref, t_ref)
        elif n_blocks == 1:
            out_ref[...] = last_tile_partial(o_ref, t_ref)
        else:
            is_last = pl.program_id(0) == n_blocks - 1

            @pl.when(jnp.logical_not(is_last))
            def _():
                out_ref[...] = full_tile_partial(o_ref, t_ref)

            @pl.when(is_last)
            def _():
                out_ref[...] = last_tile_partial(o_ref, t_ref)

    return kernel


def mix_is_loss(output, target, eps=(0.0001,), weight=(1,)):
    """JAX/Pallas equivalent of Mix_IS_loss.forward(output, target)."""
    eps = tuple(float(e) for e in eps)
    weight = tuple(float(w) for w in weight)
    assert len(eps) == len(weight)
    assert output.shape == target.shape

    n_elems = int(output.size)

    # Flatten in native dtype (kernel upcasts in-register).
    o_flat = output.reshape(-1)
    t_flat = target.reshape(-1)

    # Minimal pad: at most one (8,128) vreg worth of zeros.
    chunk = SUBLANE * LANE
    padded = _round_up(n_elems, chunk)
    pad = padded - n_elems
    if pad:
        o_flat = jnp.pad(o_flat, (0, pad))
        t_flat = jnp.pad(t_flat, (0, pad))

    rows = padded // LANE  # multiple of 8

    # Tile selection: large blocks to amortize per-grid-step overhead, but at
    # least 2 blocks whenever possible (v7x megacore on the "parallel" axis).
    if rows <= SUBLANE:
        tile_rows = rows
    elif rows <= 2 * STRIP_ROWS:
        tile_rows = _round_up(pl.cdiv(rows, 2), SUBLANE)
    else:
        tile_rows = min(MAX_TILE_ROWS, _round_up(pl.cdiv(rows, 2), STRIP_ROWS))
    strip_rows = min(STRIP_ROWS, tile_rows)
    assert tile_rows % strip_rows == 0
    n_blocks = pl.cdiv(rows, tile_rows)

    o2d = o_flat.reshape(rows, LANE)
    t2d = t_flat.reshape(rows, LANE)

    kernel = _make_is_kernel(eps, weight, tile_rows=tile_rows, strip_rows=strip_rows,
                             n_blocks=n_blocks, rows=rows, n_elems=n_elems)

    n_mix = len(eps)
    fused = n_mix > 1 and all(w == weight[0] for w in weight)
    cost = pl.CostEstimate(
        flops=n_elems * (6 * n_mix + 4),
        transcendentals=n_elems * (1 if fused else n_mix),
        bytes_accessed=int(o2d.nbytes + t2d.nbytes + n_blocks * SUBLANE * LANE * 4),
    )

    partials = pl.pallas_call(
        kernel,
        out_shape=jax.ShapeDtypeStruct((n_blocks * SUBLANE, LANE), jnp.float32),
        grid_spec=pltpu.PrefetchScalarGridSpec(
            num_scalar_prefetch=0,
            grid=(n_blocks,),
            in_specs=[
                pl.BlockSpec((tile_rows, LANE), lambda i: (i, 0)),
                pl.BlockSpec((tile_rows, LANE), lambda i: (i, 0)),
            ],
            out_specs=pl.BlockSpec((SUBLANE, LANE), lambda i: (i, 0)),
        ),
        compiler_params=pltpu.CompilerParams(
            dimension_semantics=("parallel",),
            vmem_limit_bytes=32 * 1024 * 1024,
        ),
        cost_estimate=cost,
    )(o2d, t2d)

    # Per-element constant (-sum_n w_n) was folded out of the kernel.
    return jnp.sum(partials) / jnp.float32(n_elems) - jnp.float32(sum(weight))


def _reference(output, target, eps=(0.0001,), weight=(1,)):
    ret = jnp.float32(0.0)
    for n in range(len(eps)):
        t_this = target.astype(jnp.float32) ** 2 + eps[n]
        o_this = output.astype(jnp.float32) ** 2 + eps[n]
        ret = ret + jnp.mean(t_this / o_this - jnp.log(t_this)
                             + jnp.log(o_this) - 1.0) * weight[n]
    return ret


if __name__ == "__main__":
    key = jax.random.PRNGKey(0)
    k1, k2, k3, k4 = jax.random.split(key, 4)

    # Small NCHW shapes consistent with a spectrogram-like input.
    output = jax.random.normal(k1, (2, 4, 16, 16), dtype=jnp.float32)
    target = jax.random.normal(k2, (2, 4, 16, 16), dtype=jnp.float32)

    eps1 = (0.0001,)
    weight1 = (1,)

    loss = mix_is_loss(output, target, eps1, weight1)
    loss = jax.block_until_ready(loss)
    ref = _reference(output, target, eps1, weight1)
    assert jnp.allclose(loss, ref, rtol=1e-4, atol=1e-4), (loss, ref)

    # Second check: odd-sized input (pad + boundary-strip mask path) and a
    # 2-term mix with unequal weights (per-term log path).
    output2 = jax.random.normal(k3, (3, 5, 17, 19), dtype=jnp.float32)
    target2 = jax.random.normal(k4, (3, 5, 17, 19), dtype=jnp.float32)
    eps2 = (0.0001, 0.01)
    weight2 = (1.0, 0.5)

    loss2 = mix_is_loss(output2, target2, eps2, weight2)
    loss2 = jax.block_until_ready(loss2)
    ref2 = _reference(output2, target2, eps2, weight2)
    assert jnp.allclose(loss2, ref2, rtol=1e-4, atol=1e-4), (loss2, ref2)

    print("KERNEL_OK")
</pallas_src>

<mosaic_0001>
module attributes {stable_mosaic.version = 11 : i64} {
  func.func @kernel(%arg0: i32, %arg1: memref<8x128xf32, #tpu.memory_space<vmem>>, %arg2: memref<8x128xf32, #tpu.memory_space<vmem>>, %arg3: memref<8x128xf32, #tpu.memory_space<vmem>>) attributes {dimension_semantics = [#tpu.dimension_semantics<parallel>], iteration_bounds = array<i64: 2>, scalar_prefetch = 0 : i64, scratch_operands = 0 : i64, tpu.core_type = #tpu.core_type<tc>, window_params = [{transform_indices = @transform_0, window_bounds = array<i64: 8, 128>}, {transform_indices = @transform_1, window_bounds = array<i64: 8, 128>}, {transform_indices = @transform_2, window_bounds = array<i64: 8, 128>}]} {
    %c0 = arith.constant 0 : index
    %c0_0 = arith.constant 0 : index
    %0 = vector.load %arg1[%c0, %c0_0] : memref<8x128xf32, #tpu.memory_space<vmem>>, vector<8x128xf32>
    %c0_1 = arith.constant 0 : index
    %c0_2 = arith.constant 0 : index
    %1 = vector.load %arg2[%c0_1, %c0_2] : memref<8x128xf32, #tpu.memory_space<vmem>>, vector<8x128xf32>
    %2 = arith.mulf %0, %0 : vector<8x128xf32>
    %3 = arith.mulf %1, %1 : vector<8x128xf32>
    %cst = arith.constant 9.99999974E-5 : f32
    %4 = vector.broadcast %cst : f32 to vector<8x128xf32>
    %5 = arith.addf %3, %4 : vector<8x128xf32>
    %cst_3 = arith.constant 9.99999974E-5 : f32
    %6 = vector.broadcast %cst_3 : f32 to vector<8x128xf32>
    %7 = arith.addf %2, %6 : vector<8x128xf32>
    %8 = arith.divf %5, %7 : vector<8x128xf32>
    %9 = math.log %8 : vector<8x128xf32>
    %10 = arith.subf %8, %9 : vector<8x128xf32>
    %cst_4 = arith.constant 1.000000e+00 : f32
    %11 = vector.broadcast %cst_4 : f32 to vector<8x128xf32>
    %12 = arith.mulf %11, %10 : vector<8x128xf32>
    %13 = vector.shape_cast %12 : vector<8x128xf32> to vector<1x8x128xf32>
    %cst_5 = arith.constant dense<0.000000e+00> : vector<8x128xf32>
    %14 = vector.multi_reduction <add>, %13, %cst_5 [0] : vector<1x8x128xf32> to vector<8x128xf32>
    %c0_6 = arith.constant 0 : index
    %c0_7 = arith.constant 0 : index
    %15 = vector.load %arg3[%c0_6, %c0_7] : memref<8x128xf32, #tpu.memory_space<vmem>>, vector<8x128xf32>
    tpu.vector_store %arg3[%c0_6, %c0_7], %14 {strides = array<i32>} : memref<8x128xf32, #tpu.memory_space<vmem>>, vector<8x128xf32>,
    return
  }
  func.func @transform_0(%arg0: i32) -> (i32, i32) {
    %c0_i32 = arith.constant 0 : i32
    %c0_i32_0 = arith.constant 0 : i32
    return %arg0, %c0_i32 : i32, i32
  }
  func.func @transform_1(%arg0: i32) -> (i32, i32) {
    %c0_i32 = arith.constant 0 : i32
    %c0_i32_0 = arith.constant 0 : i32
    return %arg0, %c0_i32 : i32, i32
  }
  func.func @transform_2(%arg0: i32) -> (i32, i32) {
    %c0_i32 = arith.constant 0 : i32
    %c0_i32_0 = arith.constant 0 : i32
    return %arg0, %c0_i32 : i32, i32
  }
}

</mosaic_0001>

<llo_original>
// kernel: tpu_custom_call.1
$region0: #{tpu_custom_call.1}
  #allocation0 [shape = 'u32[]', space=smem, size = 0x4, offset = 0x4, fixed_abs, tag = 'smem constant byte address 0x4 - core index']
  #allocation1 [shape = 'u32[144,128]{1,0:T(1,128)}', space=vmem, size = 0x12000, scoped, tag = 'internal scratch']
  %s0 = inlined_call_operand.hbm [shape: f32[16,128], index: 0, kind: input, shape index: {}]
  %s1 = inlined_call_operand.hbm [shape: f32[16,128], index: 1, kind: input, shape index: {}]
  %s2 = inlined_call_operand.hbm [shape: f32[16,128], index: 2, kind: output, shape index: {}]
  %s3 = sld [smem:[#allocation0]]
  $region49: #{tpu_custom_call.1} parent=0
    _
  %s5 = ssub.s32 1, %s3
  %s6 = scalar_select 0, %s5, %s3
  $region1: #{tpu_custom_call.1} parent=0
    #allocation2 [shape = 'u8[8192]{0}', space=vmem, size = 0x2000, scoped, tag = 'input window, operand 0']
    #allocation3 [shape = 's32[2]{0}', space=sflag, size = 0x8, scoped, tag = 'scoped memory for tpu_custom_call.1']
    #allocation4 [shape = 's32[2]{0}', space=sflag, size = 0x8, scoped, tag = 'scoped memory for tpu_custom_call.1']
    #allocation5 [shape = 'u8[8192]{0}', space=vmem, size = 0x2000, scoped, tag = 'input window, operand 1']
    #allocation6 [shape = 's32[2]{0}', space=sflag, size = 0x8, scoped, tag = 'scoped memory for tpu_custom_call.1']
    #allocation7 [shape = 'u8[8192]{0}', space=vmem, size = 0x2000, scoped, tag = 'output window, operand 0']
    %7 = vsyncpa [#allocation3], 0
    %s8 = scalar_lea.sflag [#allocation3], 1
    %9 = vsyncpa %s8, 0
    %10 = vsyncpa [#allocation6], 0
    %s11 = scalar_lea.sflag [#allocation6], 1
    %12 = vsyncpa %s11, 0
    %13 = vsyncpa [#allocation4], 0
    %s14 = scalar_lea.sflag [#allocation4], 1
    %15 = vsyncpa %s14, 0
    loop: start=0, step=1, limit=4
    $region2: #{tpu_custom_call.1} parent=1 // loop_pre_header
      _
    $region3: #{tpu_custom_call.1} parent=1 // loop_header
      %s17 = sphi 0, %s21
      %p18 = scmp.ge.s32.totalorder %s17, 4
      %s27 = sphi 0, %s29
      %s30 = sphi 0, %s27
      %s31 = sphi 0, %s30
      %s47 = sphi 0, %s31
      %s53 = sphi 0, %s55
      %s56 = sphi 0, %s53
      %s57 = sphi 0, %s56
      %s73 = sphi 0, %s57
      %s79 = sphi 0, %s81
      %s82 = sphi 0, %s79
      %s83 = sphi 0, %s82
      %s99 = sphi 0, %s83
    $region4: #{tpu_custom_call.1} parent=1 // loop_header_branch
      %20 = sbr.rel (%p18) target = $region8
    $region5: #{tpu_custom_call.1} parent=1 // loop_body
      %s22 = ssub.s32 %s17, 1
      %s23 = ssub.s32 %s17, 2
      %s24 = sadd.s32 %s17, 1
      %s25 = ssub.s32 %s17, %s24
      %p26 = scmp.eq.s32.totalorder %s25, 0
      %s28 = sadd.s32 %s27, 1
      %s29 = scalar_select %p26, %s27, %s28
      %p32 = pneg %p26
      %p33 = scmp.eq.s32.totalorder %s17, 1
      %p34 = por %p32, %p33
      %p35 = scmp.ne.s32.totalorder %s27, %s30
      %p36 = scmp.eq.s32.totalorder %s17, 0
      %p37 = por %p35, %p36
      %p38 = scmp.ne.s32.totalorder %s27, %s30
      %p39 = scmp.eq.s32.totalorder %s22, 1
      %p40 = por %p38, %p39
      %p41 = scmp.ne.s32.totalorder %s30, %s31
      %p42 = scmp.eq.s32.totalorder %s22, 0
      %p43 = por %p41, %p42
      %p44 = scmp.ne.s32.totalorder %s30, %s31
      %p45 = scmp.eq.s32.totalorder %s23, 1
      %p46 = por %p44, %p45
      %p48 = scmp.ne.s32.totalorder %s31, %s47
      %p49 = scmp.eq.s32.totalorder %s23, 0
      %p50 = por %p48, %p49
      %s51 = ssub.s32 %s17, %s24
      %p52 = scmp.eq.s32.totalorder %s51, 0
      %s54 = sadd.s32 %s53, 1
      %s55 = scalar_select %p52, %s53, %s54
      %p58 = pneg %p52
      %p59 = scmp.eq.s32.totalorder %s17, 1
      %p60 = por %p58, %p59
      %p61 = scmp.ne.s32.totalorder %s53, %s56
      %p62 = scmp.eq.s32.totalorder %s17, 0
      %p63 = por %p61, %p62
      %p64 = scmp.ne.s32.totalorder %s53, %s56
      %p65 = scmp.eq.s32.totalorder %s22, 1
      %p66 = por %p64, %p65
      %p67 = scmp.ne.s32.totalorder %s56, %s57
      %p68 = scmp.eq.s32.totalorder %s22, 0
      %p69 = por %p67, %p68
      %p70 = scmp.ne.s32.totalorder %s56, %s57
      %p71 = scmp.eq.s32.totalorder %s23, 1
      %p72 = por %p70, %p71
      %p74 = scmp.ne.s32.totalorder %s57, %s73
      %p75 = scmp.eq.s32.totalorder %s23, 0
      %p76 = por %p74, %p75
      %s77 = ssub.s32 %s17, %s24
      %p78 = scmp.eq.s32.totalorder %s77, 0
      %s80 = sadd.s32 %s79, 1
      %s81 = scalar_select %p78, %s79, %s80
      %p84 = pneg %p78
      %p85 = scmp.eq.s32.totalorder %s17, 1
      %p86 = por %p84, %p85
      %p87 = scmp.ne.s32.totalorder %s79, %s82
      %p88 = scmp.eq.s32.totalorder %s17, 0
      %p89 = por %p87, %p88
      %p90 = scmp.ne.s32.totalorder %s79, %s82
      %p91 = scmp.eq.s32.totalorder %s22, 1
      %p92 = por %p90, %p91
      %p93 = scmp.ne.s32.totalorder %s82, %s83
      %p94 = scmp.eq.s32.totalorder %s22, 0
      %p95 = por %p93, %p94
      %p96 = scmp.ne.s32.totalorder %s82, %s83
      %p97 = scmp.eq.s32.totalorder %s23, 1
      %p98 = por %p96, %p97
      %p100 = scmp.ne.s32.totalorder %s83, %s99
      %p101 = scmp.eq.s32.totalorder %s23, 0
      %p102 = por %p100, %p101
      %p103 = scmp.le.s32.totalorder 1, %s17
      %p104 = scmp.lt.s32.totalorder %s17, 3
      %p105 = pnand %p103, %p104
      %p106 = pneg %p105
      // Predicated region
      $region9: #{tpu_custom_call.1} parent=5 // pred_check
        _
      $region10: #{tpu_custom_call.1} parent=5 // pred_check_branch
        %108 = sbr.rel (%p105) target = $region12
      $region11: #{tpu_custom_call.1} parent=5 // pred_region
        %s109 = ssub.s32 %s17, 1
      $region12: #{tpu_custom_call.1} parent=5 // pred_fallthru
        _
      %p110 = scmp.lt.s32.totalorder %s17, 2
      // Predicated region
      $region13: #{tpu_custom_call.1} parent=5 // pred_check
        %p111 = pneg %p110
      $region14: #{tpu_custom_call.1} parent=5 // pred_check_branch
        %113 = sbr.rel (%p111) target = $region16
      $region15: #{tpu_custom_call.1} parent=5 // pred_region
        // Predicated region
        $region17: #{tpu_custom_call.1} parent=15 // pred_check
          %p114 = pneg %p37
        $region18: #{tpu_custom_call.1} parent=15 // pred_check_branch
          %116 = sbr.rel (%p114) target = $region20
        $region19: #{tpu_custom_call.1} parent=15 // pred_region
          %s117 = sand.u32 %s27, 1
          %s118 = scalar_lea.sflag [#allocation3], %s117
          %s119 = sand.u32 %s27, 1
          %s120 = smul.addr %s119, 8
          %s121 = scalar_lea.vmem [#allocation2], %s120
          %s123 = ssub.s32 128, 128
          %124 = vsyncadd %s118, %s123
          %s125 = smul.addr %s17, 128
          %s126 = scalar_lea.hbm %s0, %s125
          %s128 = sshll.u32 %s121, 4
          %s129 = int_to_ptr.vmem [resolvable:$true] %s128
          %131 = dma.hbm_to_vmem [thread:$0]  %s126, 128, %s129, %s118
        $region20: #{tpu_custom_call.1} parent=15 // pred_fallthru
          _
        // Predicated region
        $region21: #{tpu_custom_call.1} parent=15 // pred_check
          %p132 = pneg %p63
        $region22: #{tpu_custom_call.1} parent=15 // pred_check_branch
          %134 = sbr.rel (%p132) target = $region24
        $region23: #{tpu_custom_call.1} parent=15 // pred_region
          %s135 = sand.u32 %s53, 1
          %s136 = scalar_lea.sflag [#allocation6], %s135
          %s137 = sand.u32 %s53, 1
          %s138 = smul.addr %s137, 8
          %s139 = scalar_lea.vmem [#allocation5], %s138
          %s141 = ssub.s32 128, 128
          %142 = vsyncadd %s136, %s141
          %s143 = smul.addr %s17, 128
          %s144 = scalar_lea.hbm %s1, %s143
          %s146 = sshll.u32 %s139, 4
          %s147 = int_to_ptr.vmem [resolvable:$true] %s146
          %149 = dma.hbm_to_vmem [thread:$0]  %s144, 128, %s147, %s136
        $region24: #{tpu_custom_call.1} parent=15 // pred_fallthru
          _
      $region16: #{tpu_custom_call.1} parent=5 // pred_fallthru
        _
      %p150 = scmp.le.s32.totalorder 1, %s17
      %p151 = scmp.lt.s32.totalorder %s17, 3
      %p152 = pnand %p150, %p151
      %p153 = pneg %p152
      // Predicated region
      $region25: #{tpu_custom_call.1} parent=5 // pred_check
        _
      $region26: #{tpu_custom_call.1} parent=5 // pred_check_branch
        %155 = sbr.rel (%p152) target = $region28
      $region27: #{tpu_custom_call.1} parent=5 // pred_region
        %s156 = ssub.s32 %s17, 1
        %s157 = sand.u32 %s30, 1
        %s158 = scalar_lea.sflag [#allocation3], %s157
        %s159 = sand.u32 %s30, 1
        %s160 = smul.addr %s159, 8
        %s161 = scalar_lea.vmem [#allocation2], %s160
        // Predicated region
        $region29: #{tpu_custom_call.1} parent=27 // pred_check
          %p162 = pneg %p43
        $region30: #{tpu_custom_call.1} parent=27 // pred_check_branch
          %164 = sbr.rel (%p162) target = $region32
        $region31: #{tpu_custom_call.1} parent=27 // pred_region
          %165 = dma.done %s158, 128
        $region32: #{tpu_custom_call.1} parent=27 // pred_fallthru
          _
        %s166 = sand.u32 %s56, 1
        %s167 = scalar_lea.sflag [#allocation6], %s166
        %s168 = sand.u32 %s56, 1
        %s169 = smul.addr %s168, 8
        %s170 = scalar_lea.vmem [#allocation5], %s169
        // Predicated region
        $region33: #{tpu_custom_call.1} parent=27 // pred_check
          %p171 = pneg %p69
        $region34: #{tpu_custom_call.1} parent=27 // pred_check_branch
          %173 = sbr.rel (%p171) target = $region36
        $region35: #{tpu_custom_call.1} parent=27 // pred_region
          %174 = dma.done %s167, 128
        $region36: #{tpu_custom_call.1} parent=27 // pred_fallthru
          _
        %s175 = sand.u32 %s30, 1
        %s176 = scalar_lea.sflag [#allocation3], %s175
        %s177 = sand.u32 %s30, 1
        %s178 = smul.addr %s177, 8
        %s179 = scalar_lea.vmem [#allocation2], %s178
        %p180 = pneg %p43
        %p181 = pneg %p40
        %s182 = sand.u32 %s56, 1
        %s183 = scalar_lea.sflag [#allocation6], %s182
        %s184 = sand.u32 %s56, 1
        %s185 = smul.addr %s184, 8
        %s186 = scalar_lea.vmem [#allocation5], %s185
        %p187 = pneg %p69
        %p188 = pneg %p66
        %p189 = pneg %p95
        %p190 = pneg %p92
        %s191 = sand.u32 %s82, 1
        %s192 = scalar_lea.sflag [#allocation4], %s191
        %s193 = sand.u32 %s82, 1
        %s194 = smul.addr %s193, 8
        %s195 = scalar_lea.vmem [#allocation7], %s194
        %v196 = vld [vmem:[%s161] sm:$0xff]
        %v197 = vld [vmem:[%s170] sm:$0xff]
        %v198 = vmul.f32 %v196, %v196
        %v199 = vmul.f32 %v197, %v197
        %v200 = vadd.f32 %v199, 0.0001
        %v201 = vadd.f32 %v198, 0.0001
        %v202 = vrcp.pop %v201
        %v203 = vmul.f32 %v200, %v202
        %v204 = vlog2.pop %v203
        %v205 = vmul.f32 %v204, 0.6931472
        %v206 = vsub.f32 %v203, %v205
        %v207 = vadd.f32 %v206, 0.0
        %208 = vst [vmem:[%s195] sm:$0xff] %v207
        %s209 = sand.u32 %s82, 1
        %s210 = scalar_lea.sflag [#allocation4], %s209
        %s211 = sand.u32 %s82, 1
        %s212 = smul.addr %s211, 8
        %s213 = scalar_lea.vmem [#allocation7], %s212
        // Predicated region
        $region37: #{tpu_custom_call.1} parent=27 // pred_check
          %p214 = pneg %p92
        $region38: #{tpu_custom_call.1} parent=27 // pred_check_branch
          %216 = sbr.rel (%p214) target = $region40
        $region39: #{tpu_custom_call.1} parent=27 // pred_region
          %s218 = ssub.s32 128, 128
          %219 = vsyncadd %s210, %s218
          %s220 = smul.addr %s22, 128
          %s221 = scalar_lea.hbm %s2, %s220
          %s223 = sshll.u32 %s213, 4
          %s224 = int_to_ptr.vmem [resolvable:$true] %s223
          %226 = dma.vmem_to_hbm [thread:$0]  %s224, 128, %s221, %s210
        $region40: #{tpu_custom_call.1} parent=27 // pred_fallthru
          _
      $region28: #{tpu_custom_call.1} parent=5 // pred_fallthru
        _
      %p227 = scmp.le.s32.totalorder 2, %s17
      // Predicated region
      $region41: #{tpu_custom_call.1} parent=5 // pred_check
        %p228 = pneg %p227
      $region42: #{tpu_custom_call.1} parent=5 // pred_check_branch
        %230 = sbr.rel (%p228) target = $region44
      $region43: #{tpu_custom_call.1} parent=5 // pred_region
        %s231 = ssub.s32 %s17, 2
        // Predicated region
        $region45: #{tpu_custom_call.1} parent=43 // pred_check
          %p232 = pneg %p98
        $region46: #{tpu_custom_call.1} parent=43 // pred_check_branch
          %234 = sbr.rel (%p232) target = $region48
        $region47: #{tpu_custom_call.1} parent=43 // pred_region
          %s235 = sand.u32 %s83, 1
          %s236 = scalar_lea.sflag [#allocation4], %s235
          %s237 = sand.u32 %s83, 1
          %s238 = smul.addr %s237, 8
          %s239 = scalar_lea.vmem [#allocation7], %s238
          %240 = dma.done %s236, 128
        $region48: #{tpu_custom_call.1} parent=43 // pred_fallthru
          _
      $region44: #{tpu_custom_call.1} parent=5 // pred_fallthru
        _
    $region6: #{tpu_custom_call.1} parent=1 // loop_footer
      %s21 = sadd.s32 1, %s17
    $region7: #{tpu_custom_call.1} parent=1 // loop_footer_branch
      %16 = sbr.rel target = $region3
    $region8: #{tpu_custom_call.1} parent=1 // loop_exit
      _
    %241 = vsyncpa [#allocation3], 1
    %s242 = scalar_lea.sflag [#allocation3], 1
    %243 = vsyncpa %s242, 1
    %244 = vsyncpa [#allocation6], 1
    %s245 = scalar_lea.sflag [#allocation6], 1
    %246 = vsyncpa %s245, 1
    %247 = vsyncpa [#allocation4], 1
    %s248 = scalar_lea.sflag [#allocation4], 1
    %249 = vsyncpa %s248, 1

</llo_original>
